<compile_context>
chip_gen: v7x
topology: tpu7x:2x2x1
jax: 0.10.0
libtpu: 0.0.40
codegen_flags: <defaults>
</compile_context>

<pallas_src>
import functools

import jax
import jax.numpy as jnp
from jax.experimental import pallas as pl
from jax.experimental.pallas import tpu as pltpu


def _round_up(x, m):
    return ((x + m - 1) // m) * m


def _sublane(dtype):
    # Packed-row multiple for the second-to-last dim: 8 (f32), 16 (bf16), 32 (int8/fp8).
    return max(8, 32 // jnp.dtype(dtype).itemsize)


def _vmem_capacity_bytes():
    try:
        info = pltpu.get_tpu_info()
        return int(getattr(info, "vmem_capacity_bytes", 64 * 1024 * 1024))
    except Exception:
        return 64 * 1024 * 1024  # conservative fallback (v7x per-TC VMEM)


def _head_kernel(x_ref, w_ref, b_ref, o_ref):
    # x_ref: (TB, D_in)   streamed batch tile
    # w_ref: (D_in, TN)   weight panel, native [K, N] MXU layout (resident or N-tiled)
    # b_ref: (1,  TN)     bias panel
    # o_ref: (TB, N_out)  N_out == TN (N-tiled path) or == D_out <= TN (resident path)
    logits = jnp.dot(x_ref[...], w_ref[...], preferred_element_type=jnp.float32)
    logits = logits + b_ref[...].astype(jnp.float32)
    out = jax.nn.sigmoid(logits)
    n_out = o_ref.shape[-1]
    o_ref[...] = out[:, :n_out].astype(o_ref.dtype)


@functools.partial(jax.jit, static_argnames=("block_b",))
def single_layer_head(features, weight, bias, *, block_b=1024):
    """sigmoid(features @ weight.T + bias).

    features: [B, D_in]; weight: [D_out, D_in] (PyTorch nn.Linear layout); bias: [D_out].
    """
    B, D_in = features.shape
    D_out, d_in_w = weight.shape
    assert d_in_w == D_in and bias.shape == (D_out,)

    x_isz = jnp.dtype(features.dtype).itemsize
    w_isz = jnp.dtype(weight.dtype).itemsize
    o_isz = x_isz

    # Per-generation VMEM sizing.
    cap = _vmem_capacity_bytes()
    vmem_limit = int(cap * 0.75)
    budget = int(cap * 0.60)

    # One-time wrapper transpose -> native [K, N] RHS for the MXU.
    w_t = weight.T  # [D_in, D_out]

    # Lane-pad the (small) weight/bias N dimension for the matmul only.
    n_pad = _round_up(max(D_out, 1), 128)

    # Weight panel width tn: fully resident if it fits half the budget at its
    # double-buffered multiplicity, otherwise tile the output dimension.
    tn = n_pad
    while tn > 128 and 2 * D_in * tn * w_isz > budget // 2:
        tn = _round_up(tn // 2, 128)
    n_tiled = tn < n_pad

    if n_tiled:
        n_total = _round_up(n_pad, tn)  # pad so tn tiles N exactly
        n_out_tile = tn                 # kernel writes full tn-wide tiles
    else:
        n_total = n_pad
        n_out_tile = D_out              # kernel writes the unpadded head directly

    if n_total != D_out:
        w_t = jnp.pad(w_t, ((0, 0), (0, n_total - D_out)))
        bias = jnp.pad(bias, (0, n_total - D_out))
    b2d = bias.reshape(1, n_total)

    # Batch tile selection: (double-buffered) weight/bias + double-buffered
    # streamed x/out tiles + the f32 logits temp must fit the budget.
    sub = _sublane(features.dtype)
    resident = 2 * D_in * tn * w_isz + 2 * sub * tn * w_isz
    if B <= sub:
        tb = B
    else:
        tb = min(_round_up(block_b, sub), _round_up(B, sub))
        while tb > sub:
            need = resident
            need += 2 * tb * D_in * x_isz        # streamed x tiles
            need += 2 * tb * n_out_tile * o_isz  # streamed out tiles
            need += tb * tn * 4                  # f32 logits temp
            if need <= budget:
                break
            tb = max(_round_up(tb // 2, sub), sub)
        # Ensure >= 2 grid steps so both v7x TensorCores get work via the
        # "parallel" batch axis (costs one extra ~0.35us step on v5e/v6e).
        if pl.cdiv(B, tb) < 2 and B >= 2 * sub:
            tb = _round_up(pl.cdiv(B, 2), sub)

    grid_b = pl.cdiv(B, tb)

    if not n_tiled:
        grid = (grid_b,)
        in_specs = [
            pl.BlockSpec((tb, D_in), lambda i: (i, 0)),       # streamed batch tile
            pl.BlockSpec((D_in, n_total), lambda i: (0, 0)),  # resident [K, N] weight
            pl.BlockSpec((1, n_total), lambda i: (0, 0)),     # resident bias
        ]
        out_specs = pl.BlockSpec((tb, D_out), lambda i: (i, 0))
        out_shape = jax.ShapeDtypeStruct((B, D_out), features.dtype)
        dim_sem = ("parallel",)
    else:
        grid_n = n_total // tn
        grid = (grid_b, grid_n)
        in_specs = [
            pl.BlockSpec((tb, D_in), lambda i, j: (i, 0)),    # constant over j -> no re-fetch
            pl.BlockSpec((D_in, tn), lambda i, j: (0, j)),
            pl.BlockSpec((1, tn), lambda i, j: (0, j)),
        ]
        out_specs = pl.BlockSpec((tb, tn), lambda i, j: (i, j))
        out_shape = jax.ShapeDtypeStruct((B, n_total), features.dtype)
        dim_sem = ("parallel", "parallel")

    out = pl.pallas_call(
        _head_kernel,
        out_shape=out_shape,
        grid_spec=pltpu.PrefetchScalarGridSpec(
            num_scalar_prefetch=0,
            grid=grid,
            in_specs=in_specs,
            out_specs=out_specs,
        ),
        compiler_params=pltpu.CompilerParams(
            dimension_semantics=dim_sem,
            vmem_limit_bytes=vmem_limit,
        ),
    )(features, w_t, b2d)

    if n_tiled and n_total != D_out:
        out = out[:, :D_out]  # only on the rare wide-head fallback path
    return out


def init_params(key, input_size, output_size, dtype=jnp.float32):
    # Mirror nn.Linear default init: U(-1/sqrt(in), 1/sqrt(in)) for weight & bias.
    kw, kb = jax.random.split(key)
    bound = 1.0 / (input_size ** 0.5)
    weight = jax.random.uniform(
        kw, (output_size, input_size), dtype=dtype, minval=-bound, maxval=bound
    )
    bias = jax.random.uniform(
        kb, (output_size,), dtype=dtype, minval=-bound, maxval=bound
    )
    return weight, bias


if __name__ == "__main__":
    key = jax.random.PRNGKey(0)
    k_x, k_p = jax.random.split(key)

    batch, input_size, output_size = 8, 32, 16
    features = jax.random.normal(k_x, (batch, input_size), dtype=jnp.float32)
    weight, bias = init_params(k_p, input_size, output_size)

    out = single_layer_head(features, weight, bias)
    out = jax.block_until_ready(out)

    # Reference check against plain JAX (same semantics as the PyTorch module).
    ref = jax.nn.sigmoid(features @ weight.T + bias)
    assert out.shape == (batch, output_size)
    assert jnp.allclose(out, ref, atol=1e-5, rtol=1e-5)

    print("KERNEL_OK")
</pallas_src>

<mosaic_0001>
module attributes {stable_mosaic.version = 11 : i64} {
  func.func @_head_kernel(%arg0: i32, %arg1: memref<8x32xf32, #tpu.memory_space<vmem>>, %arg2: memref<32x128xf32, #tpu.memory_space<vmem>>, %arg3: memref<1x128xf32, #tpu.memory_space<vmem>>, %arg4: memref<8x16xf32, #tpu.memory_space<vmem>>) attributes {dimension_semantics = [#tpu.dimension_semantics<parallel>], iteration_bounds = array<i64: 1>, scalar_prefetch = 0 : i64, scratch_operands = 0 : i64, tpu.core_type = #tpu.core_type<tc>, window_params = [{transform_indices = @transform_0, window_bounds = array<i64: 8, 32>}, {pipeline_mode = #tpu.pipeline_mode<synchronous>, transform_indices = @transform_1, window_bounds = array<i64: 32, 128>}, {pipeline_mode = #tpu.pipeline_mode<synchronous>, transform_indices = @transform_2, window_bounds = array<i64: 1, 128>}, {transform_indices = @transform_3, window_bounds = array<i64: 8, 16>}]} {
    %c0 = arith.constant 0 : index
    %c0_0 = arith.constant 0 : index
    %0 = vector.load %arg1[%c0, %c0_0] : memref<8x32xf32, #tpu.memory_space<vmem>>, vector<8x32xf32>
    %c0_1 = arith.constant 0 : index
    %c0_2 = arith.constant 0 : index
    %1 = vector.load %arg2[%c0_1, %c0_2] : memref<32x128xf32, #tpu.memory_space<vmem>>, vector<32x128xf32>
    %cst = arith.constant dense<0.000000e+00> : vector<8x128xf32>
    %2 = tpu.matmul %0, %1, %cst {dimension_numbers = #tpu.dot_dimension_numbers<[1], [0], [0], [1], [0, 0, 1, 1], [], []>} : vector<8x32xf32>, vector<32x128xf32>, vector<8x128xf32> -> vector<8x128xf32>
    %c0_3 = arith.constant 0 : index
    %c0_4 = arith.constant 0 : index
    %3 = vector.load %arg3[%c0_3, %c0_4] : memref<1x128xf32, #tpu.memory_space<vmem>>, vector<1x128xf32>
    %4 = vector.broadcast %3 : vector<1x128xf32> to vector<8x128xf32>
    %5 = arith.addf %2, %4 : vector<8x128xf32>
    %6 = arith.negf %5 : vector<8x128xf32>
    %7 = math.exp %6 : vector<8x128xf32>
    %cst_5 = arith.constant 1.000000e+00 : f32
    %8 = vector.broadcast %cst_5 : f32 to vector<8x128xf32>
    %9 = arith.addf %8, %7 : vector<8x128xf32>
    %10 = arith.divf %8, %9 : vector<8x128xf32>
    %11 = vector.extract_strided_slice %10 {offsets = [0, 0], sizes = [8, 16], strides = [1, 1]} : vector<8x128xf32> to vector<8x16xf32>
    %c0_6 = arith.constant 0 : index
    %c0_7 = arith.constant 0 : index
    %12 = vector.load %arg4[%c0_6, %c0_7] : memref<8x16xf32, #tpu.memory_space<vmem>>, vector<8x16xf32>
    tpu.vector_store %arg4[%c0_6, %c0_7], %11 {strides = array<i32>} : memref<8x16xf32, #tpu.memory_space<vmem>>, vector<8x16xf32>,
    return
  }
  func.func @transform_0(%arg0: i32) -> (i32, i32) {
    %c0_i32 = arith.constant 0 : i32
    %c0_i32_0 = arith.constant 0 : i32
    return %arg0, %c0_i32 : i32, i32
  }
  func.func @transform_1(%arg0: i32) -> (i32, i32) {
    %c0_i32 = arith.constant 0 : i32
    %c0_i32_0 = arith.constant 0 : i32
    %c0_i32_1 = arith.constant 0 : i32
    return %c0_i32, %c0_i32_0 : i32, i32
  }
  func.func @transform_2(%arg0: i32) -> (i32, i32) {
    %c0_i32 = arith.constant 0 : i32
    %c0_i32_0 = arith.constant 0 : i32
    %c0_i32_1 = arith.constant 0 : i32
    return %c0_i32, %c0_i32_0 : i32, i32
  }
  func.func @transform_3(%arg0: i32) -> (i32, i32) {
    %c0_i32 = arith.constant 0 : i32
    %c0_i32_0 = arith.constant 0 : i32
    return %arg0, %c0_i32 : i32, i32
  }
}

</mosaic_0001>

<llo_original>
// kernel: single_layer_head.1
$region0: #{single_layer_head.1}
  #allocation0 [shape = 'u32[]', space=smem, size = 0x4, offset = 0x4, fixed_abs, tag = 'smem constant byte address 0x4 - core index']
  #allocation1 [shape = 'u32[144,128]{1,0:T(1,128)}', space=vmem, size = 0x12000, scoped, tag = 'internal scratch']
  %s0 = inlined_call_operand.vmem [shape: f32[8,32], index: 0, kind: input, shape index: {}]
  %s1 = inlined_call_operand.vmem [shape: f32[32,128], index: 1, kind: input, shape index: {}]
  %s2 = inlined_call_operand.vmem [shape: f32[1,128], index: 2, kind: input, shape index: {}]
  %s3 = inlined_call_operand.hbm [shape: f32[8,16], index: 3, kind: output, shape index: {}]
  %s4 = sld [smem:[#allocation0]]
  $region22: #{single_layer_head.1} parent=0
    _
  %s6 = ssub.s32 1, %s4
  %s7 = scalar_select 0, %s6, %s4
  $region1: #{single_layer_head.1} parent=0
    #allocation2 [shape = 'u8[4096]{0}', space=vmem, size = 0x1000, scoped, tag = 'output window, operand 0, single buffered']
    #allocation3 [shape = 's32[1]{0}', space=sflag, size = 0x4, scoped, tag = 'scoped memory for single_layer_head.1']
    %8 = vsyncpa [#allocation3], 0
    // Predicated region
    $region2: #{single_layer_head.1} parent=1 // pred_check
      _
    $region3: #{single_layer_head.1} parent=1 // pred_check_branch
      %10 = sbr.rel (0) target = $region5
    $region4: #{single_layer_head.1} parent=1 // pred_region
      _
    $region5: #{single_layer_head.1} parent=1 // pred_fallthru
      _
    // Predicated region
    $region6: #{single_layer_head.1} parent=1 // pred_check
      _
    $region7: #{single_layer_head.1} parent=1 // pred_check_branch
      %12 = sbr.rel (0) target = $region9
    $region8: #{single_layer_head.1} parent=1 // pred_region
      _
    $region9: #{single_layer_head.1} parent=1 // pred_fallthru
      _
    // Predicated region
    $region10: #{single_layer_head.1} parent=1 // pred_check
      _
    $region11: #{single_layer_head.1} parent=1 // pred_check_branch
      %14 = sbr.rel (0) target = $region13
    $region12: #{single_layer_head.1} parent=1 // pred_region
      _
    $region13: #{single_layer_head.1} parent=1 // pred_fallthru
      _
    %v15 = vld [vmem:[%s0] sm:$0xff]
    %v16 = vld [vmem:[%s1] sm:$0xff]
    %v17 = vld [vmem:[%s1 + $0x8] sm:$0xff]
    %v18 = vld [vmem:[%s1 + $0x10] sm:$0xff]
    %v19 = vld [vmem:[%s1 + $0x18] sm:$0xff]
    %v20 = vld [vmem:[%s2] sm:$0x1]
    %v22 = vlaneseq
    %v23 = vshrl.u32 %v22, 7
    %v24 = vsub.s32 0, %v23
    %v25 = vrot.slane %v20, %v24
    %vm27 = vcmask 261120
    %v29 = vsel %vm27, %v15, 0
    %31 = vmatprep.subr.mxu0 0.0
    %32 = vmatpush1.msra.mxu0 %v16
    %33 = vmatprep.subr.mxu0 0.0
    %34 = vmatpush1.msra.mxu0 %v17
    %35 = vmatprep.subr.mxu0 0.0
    %36 = vmatpush1.msra.mxu0 %v18
    %37 = vmatprep.subr.mxu0 0.0
    %38 = vmatpush1.msra.mxu0 %v19
    %39 = vmatprep.subr.mxu0 0.0
    %40 = vmatpush1.msra.mxu0 0.0
    %41 = vmatprep.subr.mxu0 0.0
    %42 = vmatpush1.msra.mxu0 0.0
    %43 = vmatprep.subr.mxu0 0.0
    %44 = vmatpush1.msra.mxu0 0.0
    %45 = vmatprep.subr.mxu0 0.0
    %46 = vmatpush1.msra.mxu0 0.0
    %47 = vmatprep.subr.mxu0 0.0
    %48 = vmatpush1.msra.mxu0 0.0
    %49 = vmatprep.subr.mxu0 0.0
    %50 = vmatpush1.msra.mxu0 0.0
    %51 = vmatprep.subr.mxu0 0.0
    %52 = vmatpush1.msra.mxu0 0.0
    %53 = vmatprep.subr.mxu0 0.0
    %54 = vmatpush1.msra.mxu0 0.0
    %55 = vmatprep.subr.mxu0 0.0
    %56 = vmatpush1.msra.mxu0 0.0
    %57 = vmatprep.subr.mxu0 0.0
    %58 = vmatpush1.msra.mxu0 0.0
    %59 = vmatprep.subr.mxu0 0.0
    %60 = vmatpush1.msra.mxu0 0.0
    %61 = vmatprep.subr.mxu0 0.0
    %62 = vmatpush1.msra.mxu0 0.0
    %63 = vmatprep.subr.mxu0 0.0
    %64 = vmatpush1.msra.mxu0 0.0
    %65 = vmatprep.subr.mxu0 0.0
    %66 = vmatpush1.msra.mxu0 0.0
    %67 = vmatprep.subr.mxu0 0.0
    %68 = vmatpush1.msra.mxu0 0.0
    %69 = vmatprep.subr.mxu0 0.0
    %70 = vmatpush1.msra.mxu0 0.0
    %71 = vmatprep.subr.mxu0 0.0
    %72 = vmatpush1.msra.mxu0 0.0
    %73 = vmatprep.subr.mxu0 0.0
    %74 = vmatpush1.msra.mxu0 0.0
    %75 = vmatprep.subr.mxu0 0.0
    %76 = vmatpush1.msra.mxu0 0.0
    %77 = vmatprep.subr.mxu0 0.0
    %78 = vmatpush1.msra.mxu0 0.0
    %79 = vmatprep.subr.mxu0 0.0
    %80 = vmatpush1.msra.mxu0 0.0
    %81 = vmatprep.subr.mxu0 0.0
    %82 = vmatpush1.msra.mxu0 0.0
    %83 = vmatprep.subr.mxu0 0.0
    %84 = vmatpush1.msra.mxu0 0.0
    %85 = vmatprep.subr.mxu0 0.0
    %86 = vmatpush1.msra.mxu0 0.0
    %87 = vmatprep.subr.mxu0 0.0
    %88 = vmatpush1.msra.mxu0 0.0
    %89 = vmatprep.subr.mxu0 0.0
    %90 = vmatpush1.msra.mxu0 0.0
    %91 = vmatprep.subr.mxu0 0.0
    %92 = vmatpush1.msra.mxu0 0.0
    %93 = vmatprep.subr.mxu0 0.0
    %94 = vmatpush1.msra.mxu0 0.0
    %95 = vmatprep.mubr.f32.mxu0 0.0
    %96 = vmatmul.mubr.f32.gmra.mrb[0].mxu0 %v29
    %v97 = vpop.f32.mrb[0].mxu0
    %v98 = vadd.f32 %v25, %v97
    %v99 = vpop.f32.mrb[0].mxu0
    %100 = vdwg.mxu0
    %v101 = vxor.u32 %v98, 2147483648
    %v102 = vmul.f32 %v101, 1.442695
    %v103 = vpow.pop %v102
    %v104 = vadd.f32 %v103, 1.0
    %v105 = vrcp.pop %v104
    %v106 = vmul.f32 1.0, %v105
    %vm107 = vcmask 130048
    %108 = vst.msk [vmem:[#allocation2] sm:$0xff] %vm107, %v106
    // Predicated region
    $region14: #{single_layer_head.1} parent=1 // pred_check
      _
    $region15: #{single_layer_head.1} parent=1 // pred_check_branch
      %110 = sbr.rel (0) target = $region17
    $region16: #{single_layer_head.1} parent=1 // pred_region
      %s112 = ssub.s32 128, 128
      %113 = vsyncadd [#allocation3], %s112
      %s115 = sshll.u32 [#allocation2], 4
      %s116 = int_to_ptr.vmem [resolvable:$true] %s115
      %118 = dma.vmem_to_hbm [thread:$0]  %s116, 128, %s3, [#allocation3]
    $region17: #{single_layer_head.1} parent=1 // pred_fallthru
      _
    // Predicated region
    $region18: #{single_layer_head.1} parent=1 // pred_check
      _
    $region19: #{single_layer_head.1} parent=1 // pred_check_branch
      %120 = sbr.rel (0) target = $region21
    $region20: #{single_layer_head.1} parent=1 // pred_region
      %121 = dma.done [#allocation3], 128
    $region21: #{single_layer_head.1} parent=1 // pred_fallthru
      _
    %122 = vsyncpa [#allocation3], 1

</llo_original>
